<compile_context>
chip_gen: v7x
topology: tpu7x:2x2x1
jax: 0.10.0
libtpu: 0.0.40
codegen_flags: <defaults>
</compile_context>

<pallas_src>
import functools
import numpy as np
import jax
import jax.numpy as jnp
from jax.experimental import pallas as pl
from jax.experimental.pallas import tpu as pltpu

HIDDEN = 32
IN_DIM = 6
PAD_DIM = 8                        # feature dim padded 6 -> 8 (sublane aligned)
W_SLAB_COLS = PAD_DIM + 2 * HIDDEN  # 72 : [w1pad | w2 | w3]
NEG_SLOPE = 0.01                   # PyTorch nn.LeakyReLU default
W_SCALE = 30.0 * np.pi * 2.0


def _leaky_relu(x):
    # max(x, a*x) == LeakyReLU for 0 < a < 1  (mul+max, no select)
    return jnp.maximum(x, NEG_SLOPE * x)


def _round_up(x, m):
    return ((x + m - 1) // m) * m


def mlp_kernel(x_ref, w_ref, w4_ref, b_ref, b4_ref, out_ref):
    """Batch-on-lanes MLP: every activation is (features, tb), batch on lanes.

    x_ref  : (8, tb)   [v ; w ; 0 ; 0]^T  (input scaling folded into w1)
    w_ref  : (32, 72)  [w1pad(32,8) | w2(32,32) | w3(32,32)]   (bf16 or f32)
    w4_ref : (8, 32)   w4 padded 6->8 rows, output scaling folded in
    b_ref  : (32, 3)   [b1 | b2 | b3]                           (f32)
    b4_ref : (8, 1)    b4 padded, output scaling folded in      (f32)
    """
    mm_dtype = w_ref.dtype
    x = x_ref[...]
    w1 = w_ref[:, 0:PAD_DIM]
    w2 = w_ref[:, PAD_DIM:PAD_DIM + HIDDEN]
    w3 = w_ref[:, PAD_DIM + HIDDEN:PAD_DIM + 2 * HIDDEN]
    b1 = b_ref[:, 0:1]
    b2 = b_ref[:, 1:2]
    b3 = b_ref[:, 2:3]

    # layer1: Linear(6->32) + LeakyReLU  (single K=8 dot; scaling folded in)
    h1 = _leaky_relu(
        jnp.dot(w1, x, preferred_element_type=jnp.float32) + b1)
    # layer2: Linear(32->32) + LeakyReLU, gated residual h1 + layer2(h1)*h1
    h2 = _leaky_relu(
        jnp.dot(w2, h1.astype(mm_dtype), preferred_element_type=jnp.float32) + b2)
    h = h1 + h2 * h1
    # dec: Linear(32->32) + LeakyReLU, then Linear(32->6pad8) (output scale folded)
    h3 = _leaky_relu(
        jnp.dot(w3, h.astype(mm_dtype), preferred_element_type=jnp.float32) + b3)
    out_ref[...] = (
        jnp.dot(w4_ref[...], h3.astype(mm_dtype),
                preferred_element_type=jnp.float32) + b4_ref[...])


def init_params(key):
    """Deterministic params in PyTorch nn.Linear layout: weight (out, in)."""
    ks = jax.random.split(key, 8)

    def linear(kw_, kb_, fan_in, fan_out):
        bound = 1.0 / np.sqrt(fan_in)
        wgt = jax.random.uniform(kw_, (fan_out, fan_in), jnp.float32, -bound, bound)
        b = jax.random.uniform(kb_, (fan_out,), jnp.float32, -bound, bound)
        return wgt, b

    w1, b1 = linear(ks[0], ks[1], IN_DIM, HIDDEN)    # layer1
    w2, b2 = linear(ks[2], ks[3], HIDDEN, HIDDEN)    # layer2
    w3, b3 = linear(ks[4], ks[5], HIDDEN, HIDDEN)    # dec[0]
    w4, b4 = linear(ks[6], ks[7], HIDDEN, IN_DIM)    # dec[2]
    return dict(w1=w1, b1=b1, w2=w2, b2=b2, w3=w3, b3=b3, w4=w4, b4=b4)


@functools.partial(jax.jit, static_argnames=("block_b", "use_bf16"))
def test_model2_forward(v, w, params, *, block_b=8192, use_bf16=True):
    B = v.shape[0]
    mm_dtype = jnp.bfloat16 if use_bf16 else jnp.float32
    in_bytes = 2 if use_bf16 else 4

    # --- fold input / output scaling into first / last linear layers ---------
    w1 = params["w1"]                                              # (32, 6)
    w1s = jnp.concatenate([w1[:, :3] / 3.0, w1[:, 3:] / W_SCALE], axis=1)
    w1p = jnp.pad(w1s, ((0, 0), (0, PAD_DIM - IN_DIM)))            # (32, 8)
    w_slab = jnp.concatenate([w1p, params["w2"], params["w3"]],
                             axis=1).astype(mm_dtype)              # (32, 72)

    out_scale = jnp.concatenate(
        [jnp.full((3, 1), 3.0, jnp.float32),
         jnp.full((3, 1), W_SCALE, jnp.float32)], axis=0)          # (6, 1)
    w4p = jnp.pad(params["w4"] * out_scale,
                  ((0, PAD_DIM - IN_DIM), (0, 0))).astype(mm_dtype)  # (8, 32)
    b_slab = jnp.stack([params["b1"], params["b2"], params["b3"]], axis=1)  # (32,3) f32
    b4p = jnp.pad(params["b4"].reshape(IN_DIM, 1) * out_scale,
                  ((0, PAD_DIM - IN_DIM), (0, 0)))                 # (8, 1) f32

    # --- batch tiling: lane-aligned tiles, >=2 grid steps when possible ------
    tb = min(block_b, _round_up(B, 128))
    Bp = _round_up(B, tb)
    if Bp // tb < 2 and Bp > 128:          # let v7x's two cores both get work
        tb = _round_up(Bp // 2, 128)
        Bp = _round_up(B, tb)
    grid = (Bp // tb,)

    # --- single fused concat + pad + transpose; batch on the lane axis -------
    x = jnp.concatenate([v.astype(jnp.float32), w.astype(jnp.float32)], axis=1)
    x8 = jnp.pad(x, ((0, Bp - B), (0, PAD_DIM - IN_DIM))).T.astype(mm_dtype)  # (8, Bp)

    flops = 2 * B * (PAD_DIM * HIDDEN + 2 * HIDDEN * HIDDEN + HIDDEN * PAD_DIM)
    bytes_accessed = (PAD_DIM * Bp * in_bytes + PAD_DIM * Bp * 4
                      + (HIDDEN * W_SLAB_COLS + PAD_DIM * HIDDEN) * in_bytes
                      + (HIDDEN * 3 + PAD_DIM) * 4)

    yt = pl.pallas_call(
        mlp_kernel,
        out_shape=jax.ShapeDtypeStruct((PAD_DIM, Bp), jnp.float32),
        grid=grid,
        in_specs=[
            pl.BlockSpec((PAD_DIM, tb), lambda i: (0, i)),        # x (streamed)
            pl.BlockSpec((HIDDEN, W_SLAB_COLS), lambda i: (0, 0)),  # weight slab
            pl.BlockSpec((PAD_DIM, HIDDEN), lambda i: (0, 0)),    # w4
            pl.BlockSpec((HIDDEN, 3), lambda i: (0, 0)),          # bias slab
            pl.BlockSpec((PAD_DIM, 1), lambda i: (0, 0)),         # b4
        ],
        out_specs=pl.BlockSpec((PAD_DIM, tb), lambda i: (0, i)),
        compiler_params=pltpu.CompilerParams(
            dimension_semantics=("parallel",),
            vmem_limit_bytes=48 * 1024 * 1024),   # < 64 MiB physical on v7x
        cost_estimate=pl.CostEstimate(
            flops=flops, transcendentals=0, bytes_accessed=bytes_accessed),
    )(x8, w_slab, w4p, b_slab, b4p)

    y = yt[:IN_DIM, :B].T        # single fused slice + transpose back
    return y[:, :3], y[:, 3:]


def reference_forward(v, w, p):
    """Pure-JAX reference mirroring the PyTorch forward ((out, in) weights)."""
    vv = v / 3.0
    ww = w / W_SCALE
    x = jnp.concatenate([vv, ww], axis=1)
    h1 = jnp.where(x @ p["w1"].T + p["b1"] > 0,
                   x @ p["w1"].T + p["b1"],
                   NEG_SLOPE * (x @ p["w1"].T + p["b1"]))
    h2_pre = h1 @ p["w2"].T + p["b2"]
    h2 = jnp.where(h2_pre > 0, h2_pre, NEG_SLOPE * h2_pre)
    h = h1 + h2 * h1
    h3_pre = h @ p["w3"].T + p["b3"]
    h3 = jnp.where(h3_pre > 0, h3_pre, NEG_SLOPE * h3_pre)
    y = h3 @ p["w4"].T + p["b4"]
    return y[:, :3] * 3.0, y[:, 3:] * W_SCALE


if __name__ == "__main__":
    key = jax.random.PRNGKey(0)
    kp, kv, kw = jax.random.split(key, 3)

    # B deliberately not a tile multiple to exercise padding + multi-step grid.
    B = 300
    params = init_params(kp)
    v = jax.random.normal(kv, (B, 3), jnp.float32)
    w = jax.random.normal(kw, (B, 3), jnp.float32) * 10.0

    v_ref, w_ref = reference_forward(v, w, params)
    v_ref, w_ref = np.asarray(v_ref), np.asarray(w_ref)

    # f32 MXU path, small tile (multi-step grid): tight correctness check.
    v32, w32 = test_model2_forward(v, w, params, block_b=128, use_bf16=False)
    jax.block_until_ready((v32, w32))
    np.testing.assert_allclose(np.asarray(v32), v_ref, rtol=1e-4, atol=1e-4)
    np.testing.assert_allclose(np.asarray(w32), w_ref, rtol=1e-4, atol=1e-4)

    # Default fast path (bf16 matmul operands, f32 accumulation): loose check.
    v16, w16 = test_model2_forward(v, w, params)
    jax.block_until_ready((v16, w16))

    def rel_err(a, b):
        return np.max(np.abs(np.asarray(a) - b)) / (np.max(np.abs(b)) + 1e-8)

    assert rel_err(v16, v_ref) < 2.5e-2, f"v err {rel_err(v16, v_ref)}"
    assert rel_err(w16, w_ref) < 2.5e-2, f"w err {rel_err(w16, w_ref)}"

    print("KERNEL_OK")
</pallas_src>

<mosaic_0001>
module attributes {stable_mosaic.version = 11 : i64} {
  func.func @mlp_kernel(%arg0: i32, %arg1: memref<8x128xf32, #tpu.memory_space<vmem>>, %arg2: memref<32x72xf32, #tpu.memory_space<vmem>>, %arg3: memref<8x32xf32, #tpu.memory_space<vmem>>, %arg4: memref<32x3xf32, #tpu.memory_space<vmem>>, %arg5: memref<8x1xf32, #tpu.memory_space<vmem>>, %arg6: memref<8x128xf32, #tpu.memory_space<vmem>>) attributes {dimension_semantics = [#tpu.dimension_semantics<parallel>], iteration_bounds = array<i64: 3>, scalar_prefetch = 0 : i64, scratch_operands = 0 : i64, tpu.core_type = #tpu.core_type<tc>, window_params = [{transform_indices = @transform_0, window_bounds = array<i64: 8, 128>}, {pipeline_mode = #tpu.pipeline_mode<synchronous>, transform_indices = @transform_1, window_bounds = array<i64: 32, 72>}, {pipeline_mode = #tpu.pipeline_mode<synchronous>, transform_indices = @transform_2, window_bounds = array<i64: 8, 32>}, {pipeline_mode = #tpu.pipeline_mode<synchronous>, transform_indices = @transform_3, window_bounds = array<i64: 32, 3>}, {pipeline_mode = #tpu.pipeline_mode<synchronous>, transform_indices = @transform_4, window_bounds = array<i64: 8, 1>}, {transform_indices = @transform_5, window_bounds = array<i64: 8, 128>}]} {
    %c0 = arith.constant 0 : index
    %c0_0 = arith.constant 0 : index
    %0 = vector.load %arg1[%c0, %c0_0] : memref<8x128xf32, #tpu.memory_space<vmem>>, vector<8x128xf32>
    %c0_1 = arith.constant 0 : index
    %c0_2 = arith.constant 0 : index
    %1 = vector.load %arg2[%c0_1, %c0_2] : memref<32x72xf32, #tpu.memory_space<vmem>>, vector<32x8xf32>
    %c0_3 = arith.constant 0 : index
    %c8 = arith.constant 8 : index
    %2 = vector.load %arg2[%c0_3, %c8] : memref<32x72xf32, #tpu.memory_space<vmem>>, vector<32x32xf32>
    %c0_4 = arith.constant 0 : index
    %c40 = arith.constant 40 : index
    %3 = vector.load %arg2[%c0_4, %c40] : memref<32x72xf32, #tpu.memory_space<vmem>>, vector<32x32xf32>
    %c0_5 = arith.constant 0 : index
    %c0_6 = arith.constant 0 : index
    %4 = vector.load %arg4[%c0_5, %c0_6] : memref<32x3xf32, #tpu.memory_space<vmem>>, vector<32x1xf32>
    %c0_7 = arith.constant 0 : index
    %c1 = arith.constant 1 : index
    %5 = vector.load %arg4[%c0_7, %c1] : memref<32x3xf32, #tpu.memory_space<vmem>>, vector<32x1xf32>
    %c0_8 = arith.constant 0 : index
    %c2 = arith.constant 2 : index
    %6 = vector.load %arg4[%c0_8, %c2] : memref<32x3xf32, #tpu.memory_space<vmem>>, vector<32x1xf32>
    %cst = arith.constant dense<0.000000e+00> : vector<32x128xf32>
    %7 = tpu.matmul %1, %0, %cst {dimension_numbers = #tpu.dot_dimension_numbers<[1], [0], [0], [1], [0, 0, 1, 1], [], []>} : vector<32x8xf32>, vector<8x128xf32>, vector<32x128xf32> -> vector<32x128xf32>
    %8 = vector.broadcast %4 : vector<32x1xf32> to vector<32x128xf32>
    %9 = arith.addf %7, %8 : vector<32x128xf32>
    %cst_9 = arith.constant 0.00999999977 : f32
    %10 = vector.broadcast %cst_9 : f32 to vector<32x128xf32>
    %11 = arith.mulf %10, %9 : vector<32x128xf32>
    %12 = arith.maximumf %9, %11 : vector<32x128xf32>
    %cst_10 = arith.constant dense<0.000000e+00> : vector<32x128xf32>
    %13 = tpu.matmul %2, %12, %cst_10 {dimension_numbers = #tpu.dot_dimension_numbers<[1], [0], [0], [1], [0, 0, 1, 1], [], []>} : vector<32x32xf32>, vector<32x128xf32>, vector<32x128xf32> -> vector<32x128xf32>
    %14 = vector.broadcast %5 : vector<32x1xf32> to vector<32x128xf32>
    %15 = arith.addf %13, %14 : vector<32x128xf32>
    %cst_11 = arith.constant 0.00999999977 : f32
    %16 = vector.broadcast %cst_11 : f32 to vector<32x128xf32>
    %17 = arith.mulf %16, %15 : vector<32x128xf32>
    %18 = arith.maximumf %15, %17 : vector<32x128xf32>
    %19 = arith.mulf %18, %12 : vector<32x128xf32>
    %20 = arith.addf %12, %19 : vector<32x128xf32>
    %cst_12 = arith.constant dense<0.000000e+00> : vector<32x128xf32>
    %21 = tpu.matmul %3, %20, %cst_12 {dimension_numbers = #tpu.dot_dimension_numbers<[1], [0], [0], [1], [0, 0, 1, 1], [], []>} : vector<32x32xf32>, vector<32x128xf32>, vector<32x128xf32> -> vector<32x128xf32>
    %22 = vector.broadcast %6 : vector<32x1xf32> to vector<32x128xf32>
    %23 = arith.addf %21, %22 : vector<32x128xf32>
    %cst_13 = arith.constant 0.00999999977 : f32
    %24 = vector.broadcast %cst_13 : f32 to vector<32x128xf32>
    %25 = arith.mulf %24, %23 : vector<32x128xf32>
    %26 = arith.maximumf %23, %25 : vector<32x128xf32>
    %c0_14 = arith.constant 0 : index
    %c0_15 = arith.constant 0 : index
    %27 = vector.load %arg3[%c0_14, %c0_15] : memref<8x32xf32, #tpu.memory_space<vmem>>, vector<8x32xf32>
    %cst_16 = arith.constant dense<0.000000e+00> : vector<8x128xf32>
    %28 = tpu.matmul %27, %26, %cst_16 {dimension_numbers = #tpu.dot_dimension_numbers<[1], [0], [0], [1], [0, 0, 1, 1], [], []>} : vector<8x32xf32>, vector<32x128xf32>, vector<8x128xf32> -> vector<8x128xf32>
    %c0_17 = arith.constant 0 : index
    %c0_18 = arith.constant 0 : index
    %29 = vector.load %arg5[%c0_17, %c0_18] : memref<8x1xf32, #tpu.memory_space<vmem>>, vector<8x1xf32>
    %30 = vector.broadcast %29 : vector<8x1xf32> to vector<8x128xf32>
    %31 = arith.addf %28, %30 : vector<8x128xf32>
    %c0_19 = arith.constant 0 : index
    %c0_20 = arith.constant 0 : index
    %32 = vector.load %arg6[%c0_19, %c0_20] : memref<8x128xf32, #tpu.memory_space<vmem>>, vector<8x128xf32>
    tpu.vector_store %arg6[%c0_19, %c0_20], %31 {strides = array<i32>} : memref<8x128xf32, #tpu.memory_space<vmem>>, vector<8x128xf32>,
    return
  }
  func.func @transform_0(%arg0: i32) -> (i32, i32) {
    %c0_i32 = arith.constant 0 : i32
    %c0_i32_0 = arith.constant 0 : i32
    return %c0_i32, %arg0 : i32, i32
  }
  func.func @transform_1(%arg0: i32) -> (i32, i32) {
    %c0_i32 = arith.constant 0 : i32
    %c0_i32_0 = arith.constant 0 : i32
    %c0_i32_1 = arith.constant 0 : i32
    return %c0_i32, %c0_i32_0 : i32, i32
  }
  func.func @transform_2(%arg0: i32) -> (i32, i32) {
    %c0_i32 = arith.constant 0 : i32
    %c0_i32_0 = arith.constant 0 : i32
    %c0_i32_1 = arith.constant 0 : i32
    return %c0_i32, %c0_i32_0 : i32, i32
  }
  func.func @transform_3(%arg0: i32) -> (i32, i32) {
    %c0_i32 = arith.constant 0 : i32
    %c0_i32_0 = arith.constant 0 : i32
    %c0_i32_1 = arith.constant 0 : i32
    return %c0_i32, %c0_i32_0 : i32, i32
  }
  func.func @transform_4(%arg0: i32) -> (i32, i32) {
    %c0_i32 = arith.constant 0 : i32
    %c0_i32_0 = arith.constant 0 : i32
    %c0_i32_1 = arith.constant 0 : i32
    return %c0_i32, %c0_i32_0 : i32, i32
  }
  func.func @transform_5(%arg0: i32) -> (i32, i32) {
    %c0_i32 = arith.constant 0 : i32
    %c0_i32_0 = arith.constant 0 : i32
    return %c0_i32, %arg0 : i32, i32
  }
}

</mosaic_0001>

<llo_original>
// kernel: test_model2_forward.1
$region0: #{test_model2_forward.1}
  #allocation0 [shape = 'u32[]', space=smem, size = 0x4, offset = 0x4, fixed_abs, tag = 'smem constant byte address 0x4 - core index']
  #allocation1 [shape = 'u32[144,128]{1,0:T(1,128)}', space=vmem, size = 0x12000, scoped, tag = 'internal scratch']
  %s0 = inlined_call_operand.vmem [shape: f32[8,384], index: 0, kind: input, shape index: {}]
  %s1 = inlined_call_operand.vmem [shape: f32[32,72], index: 1, kind: input, shape index: {}]
  %s2 = inlined_call_operand.vmem [shape: f32[8,32], index: 2, kind: input, shape index: {}]
  %s3 = inlined_call_operand.vmem [shape: f32[32,3], index: 3, kind: input, shape index: {}]
  %s4 = inlined_call_operand.vmem [shape: f32[8,1], index: 4, kind: input, shape index: {}]
  %s5 = inlined_call_operand.vmem [shape: f32[8,384], index: 5, kind: output, shape index: {}]
  %s6 = sld [smem:[#allocation0]]
  $region53: #{test_model2_forward.1} parent=0
    _
  %s8 = ssub.s32 1, %s6
  %s9 = scalar_select 0, %s8, %s6
  loop: start=0, step=1, limit=5
  $region2: #{test_model2_forward.1} parent=0 // loop_pre_header
    _
  $region3: #{test_model2_forward.1} parent=0 // loop_header
    %s11 = sphi 0, %s15
    %p12 = scmp.ge.s32.totalorder %s11, 5
    %s21 = sphi 0, %s23
    %s24 = sphi 0, %s21
    %s25 = sphi 0, %s24
    %s41 = sphi 0, %s25
    %s45 = sphi 0, %s45
    %s47 = sphi 0, %s45
    %s48 = sphi 0, %s47
    %s62 = sphi 0, %s48
    %s66 = sphi 0, %s66
    %s68 = sphi 0, %s66
    %s69 = sphi 0, %s68
    %s83 = sphi 0, %s69
    %s87 = sphi 0, %s87
    %s89 = sphi 0, %s87
    %s90 = sphi 0, %s89
    %s104 = sphi 0, %s90
    %s108 = sphi 0, %s108
    %s110 = sphi 0, %s108
    %s111 = sphi 0, %s110
    %s125 = sphi 0, %s111
    %s131 = sphi 0, %s133
    %s134 = sphi 0, %s131
    %s135 = sphi 0, %s134
    %s151 = sphi 0, %s135
  $region4: #{test_model2_forward.1} parent=0 // loop_header_branch
    %14 = sbr.rel (%p12) target = $region8
  $region5: #{test_model2_forward.1} parent=0 // loop_body
    %s16 = ssub.s32 %s11, 1
    %s17 = ssub.s32 %s11, 2
    %s18 = sadd.s32 %s11, 1
    %s19 = ssub.s32 %s11, %s18
    %p20 = scmp.eq.s32.totalorder %s19, 0
    %s22 = sadd.s32 %s21, 1
    %s23 = scalar_select %p20, %s21, %s22
    %p26 = pneg %p20
    %p27 = scmp.eq.s32.totalorder %s11, 2
    %p28 = por %p26, %p27
    %p29 = scmp.ne.s32.totalorder %s21, %s24
    %p30 = scmp.eq.s32.totalorder %s11, 0
    %p31 = por %p29, %p30
    %p32 = scmp.ne.s32.totalorder %s21, %s24
    %p33 = scmp.eq.s32.totalorder %s16, 2
    %p34 = por %p32, %p33
    %p35 = scmp.ne.s32.totalorder %s24, %s25
    %p36 = scmp.eq.s32.totalorder %s16, 0
    %p37 = por %p35, %p36
    %p38 = scmp.ne.s32.totalorder %s24, %s25
    %p39 = scmp.eq.s32.totalorder %s17, 2
    %p40 = por %p38, %p39
    %p42 = scmp.ne.s32.totalorder %s25, %s41
    %p43 = scmp.eq.s32.totalorder %s17, 0
    %p44 = por %p42, %p43
    %s46 = sadd.s32 %s45, 1
    %p49 = scmp.eq.s32.totalorder %s11, 2
    %p50 = scmp.ne.s32.totalorder %s45, %s47
    %p51 = scmp.eq.s32.totalorder %s11, 0
    %p52 = por %p50, %p51
    %p53 = scmp.ne.s32.totalorder %s45, %s47
    %p54 = scmp.eq.s32.totalorder %s16, 2
    %p55 = por %p53, %p54
    %p56 = scmp.ne.s32.totalorder %s47, %s48
    %p57 = scmp.eq.s32.totalorder %s16, 0
    %p58 = por %p56, %p57
    %p59 = scmp.ne.s32.totalorder %s47, %s48
    %p60 = scmp.eq.s32.totalorder %s17, 2
    %p61 = por %p59, %p60
    %p63 = scmp.ne.s32.totalorder %s48, %s62
    %p64 = scmp.eq.s32.totalorder %s17, 0
    %p65 = por %p63, %p64
    %s67 = sadd.s32 %s66, 1
    %p70 = scmp.eq.s32.totalorder %s11, 2
    %p71 = scmp.ne.s32.totalorder %s66, %s68
    %p72 = scmp.eq.s32.totalorder %s11, 0
    %p73 = por %p71, %p72
    %p74 = scmp.ne.s32.totalorder %s66, %s68
    %p75 = scmp.eq.s32.totalorder %s16, 2
    %p76 = por %p74, %p75
    %p77 = scmp.ne.s32.totalorder %s68, %s69
    %p78 = scmp.eq.s32.totalorder %s16, 0
    %p79 = por %p77, %p78
    %p80 = scmp.ne.s32.totalorder %s68, %s69
    %p81 = scmp.eq.s32.totalorder %s17, 2
    %p82 = por %p80, %p81
    %p84 = scmp.ne.s32.totalorder %s69, %s83
    %p85 = scmp.eq.s32.totalorder %s17, 0
    %p86 = por %p84, %p85
    %s88 = sadd.s32 %s87, 1
    %p91 = scmp.eq.s32.totalorder %s11, 2
    %p92 = scmp.ne.s32.totalorder %s87, %s89
    %p93 = scmp.eq.s32.totalorder %s11, 0
    %p94 = por %p92, %p93
    %p95 = scmp.ne.s32.totalorder %s87, %s89
    %p96 = scmp.eq.s32.totalorder %s16, 2
    %p97 = por %p95, %p96
    %p98 = scmp.ne.s32.totalorder %s89, %s90
    %p99 = scmp.eq.s32.totalorder %s16, 0
    %p100 = por %p98, %p99
    %p101 = scmp.ne.s32.totalorder %s89, %s90
    %p102 = scmp.eq.s32.totalorder %s17, 2
    %p103 = por %p101, %p102
    %p105 = scmp.ne.s32.totalorder %s90, %s104
    %p106 = scmp.eq.s32.totalorder %s17, 0
    %p107 = por %p105, %p106
    %s109 = sadd.s32 %s108, 1
    %p112 = scmp.eq.s32.totalorder %s11, 2
    %p113 = scmp.ne.s32.totalorder %s108, %s110
    %p114 = scmp.eq.s32.totalorder %s11, 0
    %p115 = por %p113, %p114
    %p116 = scmp.ne.s32.totalorder %s108, %s110
    %p117 = scmp.eq.s32.totalorder %s16, 2
    %p118 = por %p116, %p117
    %p119 = scmp.ne.s32.totalorder %s110, %s111
    %p120 = scmp.eq.s32.totalorder %s16, 0
    %p121 = por %p119, %p120
    %p122 = scmp.ne.s32.totalorder %s110, %s111
    %p123 = scmp.eq.s32.totalorder %s17, 2
    %p124 = por %p122, %p123
    %p126 = scmp.ne.s32.totalorder %s111, %s125
    %p127 = scmp.eq.s32.totalorder %s17, 0
    %p128 = por %p126, %p127
    %s129 = ssub.s32 %s11, %s18
    %p130 = scmp.eq.s32.totalorder %s129, 0
    %s132 = sadd.s32 %s131, 1
    %s133 = scalar_select %p130, %s131, %s132
    %p136 = pneg %p130
    %p137 = scmp.eq.s32.totalorder %s11, 2
    %p138 = por %p136, %p137
    %p139 = scmp.ne.s32.totalorder %s131, %s134
    %p140 = scmp.eq.s32.totalorder %s11, 0
    %p141 = por %p139, %p140
    %p142 = scmp.ne.s32.totalorder %s131, %s134
    %p143 = scmp.eq.s32.totalorder %s16, 2
    %p144 = por %p142, %p143
    %p145 = scmp.ne.s32.totalorder %s134, %s135
    %p146 = scmp.eq.s32.totalorder %s16, 0
    %p147 = por %p145, %p146
    %p148 = scmp.ne.s32.totalorder %s134, %s135
    %p149 = scmp.eq.s32.totalorder %s17, 2
    %p150 = por %p148, %p149
    %p152 = scmp.ne.s32.totalorder %s135, %s151
    %p153 = scmp.eq.s32.totalorder %s17, 0
    %p154 = por %p152, %p153
    %p155 = scmp.le.s32.totalorder 1, %s11
    %p156 = scmp.lt.s32.totalorder %s11, 4
    %p157 = pnand %p155, %p156
    %p158 = pneg %p157
    // Predicated region
    $region9: #{test_model2_forward.1} parent=5 // pred_check
      _
    $region10: #{test_model2_forward.1} parent=5 // pred_check_branch
      %160 = sbr.rel (%p157) target = $region12
    $region11: #{test_model2_forward.1} parent=5 // pred_region
      %s161 = ssub.s32 %s11, 1
      // Predicated region
      $region13: #{test_model2_forward.1} parent=11 // pred_check
        %p162 = pneg %p58
      $region14: #{test_model2_forward.1} parent=11 // pred_check_branch
        %164 = sbr.rel (%p162) target = $region16
      $region15: #{test_model2_forward.1} parent=11 // pred_region
        _
      $region16: #{test_model2_forward.1} parent=11 // pred_fallthru
        _
      // Predicated region
      $region17: #{test_model2_forward.1} parent=11 // pred_check
        %p165 = pneg %p79
      $region18: #{test_model2_forward.1} parent=11 // pred_check_branch
        %167 = sbr.rel (%p165) target = $region20
      $region19: #{test_model2_forward.1} parent=11 // pred_region
        _
      $region20: #{test_model2_forward.1} parent=11 // pred_fallthru
        _
      // Predicated region
      $region21: #{test_model2_forward.1} parent=11 // pred_check
        %p168 = pneg %p100
      $region22: #{test_model2_forward.1} parent=11 // pred_check_branch
        %170 = sbr.rel (%p168) target = $region24
      $region23: #{test_model2_forward.1} parent=11 // pred_region
        _
      $region24: #{test_model2_forward.1} parent=11 // pred_fallthru
        _
      // Predicated region
      $region25: #{test_model2_forward.1} parent=11 // pred_check
        %p171 = pneg %p121
      $region26: #{test_model2_forward.1} parent=11 // pred_check_branch
        %173 = sbr.rel (%p171) target = $region28
      $region27: #{test_model2_forward.1} parent=11 // pred_region
        _
      $region28: #{test_model2_forward.1} parent=11 // pred_fallthru
        _
    $region12: #{test_model2_forward.1} parent=5 // pred_fallthru
      _
    %p174 = scmp.lt.s32.totalorder %s11, 3
    // Predicated region
    $region29: #{test_model2_forward.1} parent=5 // pred_check
      %p175 = pneg %p174
    $region30: #{test_model2_forward.1} parent=5 // pred_check_branch
      %177 = sbr.rel (%p175) target = $region32
    $region31: #{test_model2_forward.1} parent=5 // pred_region
      // Predicated region
      $region33: #{test_model2_forward.1} parent=31 // pred_check
        %p178 = pneg %p31
      $region34: #{test_model2_forward.1} parent=31 // pred_check_branch
        %180 = sbr.rel (%p178) target = $region36
      $region35: #{test_model2_forward.1} parent=31 // pred_region
        %p181 = scmp.lt.s32.totalorder %s11, 2
        %s182 = scalar_select %p181, %s11, 2
        %s183 = smul.addr %s182, 8
        %s184 = scalar_lea.vmem %s0, %s183
      $region36: #{test_model2_forward.1} parent=31 // pred_fallthru
        _
    $region32: #{test_model2_forward.1} parent=5 // pred_fallthru
      _
    %p185 = scmp.le.s32.totalorder 1, %s11
    %p186 = scmp.lt.s32.totalorder %s11, 4
    %p187 = pnand %p185, %p186
    %p188 = pneg %p187
    // Predicated region
    $region37: #{test_model2_forward.1} parent=5 // pred_check
      _
    $region38: #{test_model2_forward.1} parent=5 // pred_check_branch
      %190 = sbr.rel (%p187) target = $region40
    $region39: #{test_model2_forward.1} parent=5 // pred_region
      %s191 = ssub.s32 %s11, 1
      %p192 = scmp.lt.s32.totalorder %s16, 2
      %s193 = scalar_select %p192, %s16, 2
      %s194 = smul.addr %s193, 8
      %s195 = scalar_lea.vmem %s0, %s194
      %p196 = pneg %p37
      %p197 = pneg %p34
      %p198 = pneg %p58
      %p199 = pneg %p55
      %p200 = pneg %p79
      %p201 = pneg %p76
      %p202 = pneg %p100
      %p203 = pneg %p97
      %p204 = pneg %p121
      %p205 = pneg %p118
      %p206 = pneg %p147
      %p207 = pneg %p144
      %p208 = scmp.lt.s32.totalorder %s16, 2
      %s209 = scalar_select %p208, %s16, 2
      %s210 = smul.addr %s209, 8
      %s211 = scalar_lea.vmem %s5, %s210
      %p212 = scmp.lt.s32.totalorder %s16, 2
      %s213 = scalar_select %p212, %s16, 2
      %s214 = smul.addr %s213, 8
      %s215 = scalar_lea.vmem %s0, %s214
      %p216 = scmp.lt.s32.totalorder %s16, 2
      %s217 = scalar_select %p216, %s16, 2
      %s218 = smul.addr %s217, 8
      %s219 = scalar_lea.vmem %s5, %s218
      %v220 = vld [vmem:[%s215] sm:$0xff]
      %v221 = vld [vmem:[%s1] sm:$0xff]
      %v222 = vld [vmem:[%s1 + $0x8] sm:$0xff]
      %v223 = vld [vmem:[%s1 + $0x10] sm:$0xff]
      %v224 = vld [vmem:[%s1 + $0x18] sm:$0xff]
      %v225 = vld [vmem:[%s3] sm:$0xff]
      %v226 = vld [vmem:[%s3 + $0x8] sm:$0xff]
      %v227 = vld [vmem:[%s3 + $0x10] sm:$0xff]
      %v228 = vld [vmem:[%s3 + $0x18] sm:$0xff]
      %230 = vset.pattern.permute.xlu0 0
      %231 = vperm.xlu0 %230, %v225
      %v232 = vpop.permute.xlu0 %231
      %235 = vset.pattern.permute.xlu0 0
      %236 = vperm.xlu0 %235, %v226
      %v237 = vpop.permute.xlu0 %236
      %240 = vset.pattern.permute.xlu0 0
      %241 = vperm.xlu0 %240, %v227
      %v242 = vpop.permute.xlu0 %241
      %245 = vset.pattern.permute.xlu0 0
      %246 = vperm.xlu0 %245, %v228
      %v247 = vpop.permute.xlu0 %246
      %vm249 = vcmask 64512
      %v251 = vsel %vm249, %v221, 0
      %v254 = vsel %vm249, %v222, 0
      %v257 = vsel %vm249, %v223, 0
      %v260 = vsel %vm249, %v224, 0
      %262 = vmatprep.subr.mxu0 0.0
      %263 = vmatpush1.msra.mxu0 %v220
      %264 = vmatprep.subr.mxu0 0.0
      %265 = vmatpush1.msra.mxu0 0.0
      %266 = vmatprep.subr.mxu0 0.0
      %267 = vmatpush1.msra.mxu0 0.0
      %268 = vmatprep.subr.mxu0 0.0
      %269 = vmatpush1.msra.mxu0 0.0
      %270 = vmatprep.subr.mxu0 0.0
      %271 = vmatpush1.msra.mxu0 0.0
      %272 = vmatprep.subr.mxu0 0.0
      %273 = vmatpush1.msra.mxu0 0.0
      %274 = vmatprep.subr.mxu0 0.0
      %275 = vmatpush1.msra.mxu0 0.0
      %276 = vmatprep.subr.mxu0 0.0
      %277 = vmatpush1.msra.mxu0 0.0
      %278 = vmatprep.subr.mxu0 0.0
      %279 = vmatpush1.msra.mxu0 0.0
      %280 = vmatprep.subr.mxu0 0.0
      %281 = vmatpush1.msra.mxu0 0.0
      %282 = vmatprep.subr.mxu0 0.0
      %283 = vmatpush1.msra.mxu0 0.0
      %284 = vmatprep.subr.mxu0 0.0
      %285 = vmatpush1.msra.mxu0 0.0
      %286 = vmatprep.subr.mxu0 0.0
      %287 = vmatpush1.msra.mxu0 0.0
      %288 = vmatprep.subr.mxu0 0.0
      %289 = vmatpush1.msra.mxu0 0.0
      %290 = vmatprep.subr.mxu0 0.0
      %291 = vmatpush1.msra.mxu0 0.0
      %292 = vmatprep.subr.mxu0 0.0
      %293 = vmatpush1.msra.mxu0 0.0
      %294 = vmatprep.subr.mxu0 0.0
      %295 = vmatpush1.msra.mxu0 0.0
      %296 = vmatprep.subr.mxu0 0.0
      %297 = vmatpush1.msra.mxu0 0.0
      %298 = vmatprep.subr.mxu0 0.0
      %299 = vmatpush1.msra.mxu0 0.0
      %300 = vmatprep.subr.mxu0 0.0
      %301 = vmatpush1.msra.mxu0 0.0
      %302 = vmatprep.subr.mxu0 0.0
      %303 = vmatpush1.msra.mxu0 0.0
      %304 = vmatprep.subr.mxu0 0.0
      %305 = vmatpush1.msra.mxu0 0.0
      %306 = vmatprep.subr.mxu0 0.0
      %307 = vmatpush1.msra.mxu0 0.0
      %308 = vmatprep.subr.mxu0 0.0
      %309 = vmatpush1.msra.mxu0 0.0
      %310 = vmatprep.subr.mxu0 0.0
      %311 = vmatpush1.msra.mxu0 0.0
      %312 = vmatprep.subr.mxu0 0.0
      %313 = vmatpush1.msra.mxu0 0.0
      %314 = vmatprep.subr.mxu0 0.0
      %315 = vmatpush1.msra.mxu0 0.0
      %316 = vmatprep.subr.mxu0 0.0
      %317 = vmatpush1.msra.mxu0 0.0
      %318 = vmatprep.subr.mxu0 0.0
      %319 = vmatpush1.msra.mxu0 0.0
      %320 = vmatprep.subr.mxu0 0.0
      %321 = vmatpush1.msra.mxu0 0.0
      %322 = vmatprep.subr.mxu0 0.0
      %323 = vmatpush1.msra.mxu0 0.0
      %324 = vmatprep.subr.mxu0 0.0
      %325 = vmatpush1.msra.mxu0 0.0
      %326 = vmatprep.mubr.f32.mxu0 0.0
      %327 = vmatmul.mubr.f32.gmra.mrb[0].mxu0 %v251
      %v328 = vpop.f32.mrb[0].mxu0
      %v329 = vadd.f32 %v232, %v328
      %v330 = vpop.f32.mrb[0].mxu0
      %331 = vmatprep.mubr.f32.mxu0 0.0
      %332 = vmatmul.mubr.f32.gmra.mrb[0].mxu0 %v254
      %v333 = vpop.f32.mrb[0].mxu0
      %v334 = vadd.f32 %v237, %v333
      %v335 = vpop.f32.mrb[0].mxu0
      %336 = vmatprep.mubr.f32.mxu0 0.0
      %337 = vmatmul.mubr.f32.gmra.mrb[0].mxu0 %v257
      %v338 = vpop.f32.mrb[0].mxu0
      %v339 = vadd.f32 %v242, %v338
      %v340 = vpop.f32.mrb[0].mxu0
      %341 = vmatprep.mubr.f32.mxu0 0.0
      %342 = vmatmul.mubr.f32.gmra.mrb[0].mxu0 %v260
      %v343 = vpop.f32.mrb[0].mxu0
      %v344 = vadd.f32 %v247, %v343
      %v345 = vpop.f32.mrb[0].mxu0
      %346 = vdwg.mxu0
      %v347 = vmul.f32 %v329, 0.01
      %v348 = vmul.f32 %v334, 0.01
      %v349 = vmul.f32 %v339, 0.01
      %v350 = vmul.f32 %v344, 0.01
      %v351 = vmax.f32 %v329, %v347
      %v352 = vmax.f32 %v334, %v348
      %v353 = vmax.f32 %v339, %v349
      %v354 = vmax.f32 %v344, %v350
      %355 = vset.pattern.permute.xlu0 1
      %356 = vperm.xlu0 %355, %v225
      %v357 = vpop.permute.xlu0 %356
      %359 = vset.pattern.permute.xlu0 1
      %360 = vperm.xlu0 %359, %v226
      %v361 = vpop.permute.xlu0 %360
      %363 = vset.pattern.permute.xlu0 1
      %364 = vperm.xlu0 %363, %v227
      %v365 = vpop.permute.xlu0 %364
      %367 = vset.pattern.permute.xlu0 1
      %368 = vperm.xlu0 %367, %v228
      %v369 = vpop.permute.xlu0 %368
      %371 = vrot.lane.b32.xlu0 %v221, 120
      %v372 = vpop.permute.xlu0 %371
      %373 = vrot.lane.b32.xlu0 %v222, 120
      %v374 = vpop.permute.xlu0 %373
      %375 = vrot.lane.b32.xlu0 %v223, 120
      %v376 = vpop.permute.xlu0 %375
      %377 = vrot.lane.b32.xlu0 %v224, 120
      %v378 = vpop.permute.xlu0 %377
      %vm379 = vcmask 261120
      %v380 = vsel %vm379, %v372, 0
      %v382 = vsel %vm379, %v374, 0
      %v384 = vsel %vm379, %v376, 0
      %v386 = vsel %vm379, %v378, 0
      %388 = vmatprep.subr.mxu0 0.0
      %389 = vmatpush1.msra.mxu0 %v351
      %390 = vmatprep.subr.mxu0 0.0
      %391 = vmatpush1.msra.mxu0 %v352
      %392 = vmatprep.subr.mxu0 0.0
      %393 = vmatpush1.msra.mxu0 %v353
      %394 = vmatprep.subr.mxu0 0.0
      %395 = vmatpush1.msra.mxu0 %v354
      %396 = vmatprep.subr.mxu0 0.0
      %397 = vmatpush1.msra.mxu0 0.0
      %398 = vmatprep.subr.mxu0 0.0
      %399 = vmatpush1.msra.mxu0 0.0
      %400 = vmatprep.subr.mxu0 0.0
      %401 = vmatpush1.msra.mxu0 0.0
      %402 = vmatprep.subr.mxu0 0.0
      %403 = vmatpush1.msra.mxu0 0.0
      %404 = vmatprep.subr.mxu0 0.0
      %405 = vmatpush1.msra.mxu0 0.0
      %406 = vmatprep.subr.mxu0 0.0
      %407 = vmatpush1.msra.mxu0 0.0
      %408 = vmatprep.subr.mxu0 0.0
      %409 = vmatpush1.msra.mxu0 0.0
      %410 = vmatprep.subr.mxu0 0.0
      %411 = vmatpush1.msra.mxu0 0.0
      %412 = vmatprep.subr.mxu0 0.0
      %413 = vmatpush1.msra.mxu0 0.0
      %414 = vmatprep.subr.mxu0 0.0
      %415 = vmatpush1.msra.mxu0 0.0
      %416 = vmatprep.subr.mxu0 0.0
      %417 = vmatpush1.msra.mxu0 0.0
      %418 = vmatprep.subr.mxu0 0.0
      %419 = vmatpush1.msra.mxu0 0.0
      %420 = vmatprep.subr.mxu0 0.0
      %421 = vmatpush1.msra.mxu0 0.0
      %422 = vmatprep.subr.mxu0 0.0
      %423 = vmatpush1.msra.mxu0 0.0
      %424 = vmatprep.subr.mxu0 0.0
      %425 = vmatpush1.msra.mxu0 0.0
      %426 = vmatprep.subr.mxu0 0.0
      %427 = vmatpush1.msra.mxu0 0.0
      %428 = vmatprep.subr.mxu0 0.0
      %429 = vmatpush1.msra.mxu0 0.0
      %430 = vmatprep.subr.mxu0 0.0
      %431 = vmatpush1.msra.mxu0 0.0
      %432 = vmatprep.subr.mxu0 0.0
      %433 = vmatpush1.msra.mxu0 0.0
      %434 = vmatprep.subr.mxu0 0.0
      %435 = vmatpush1.msra.mxu0 0.0
      %436 = vmatprep.subr.mxu0 0.0
      %437 = vmatpush1.msra.mxu0 0.0
      %438 = vmatprep.subr.mxu0 0.0
      %439 = vmatpush1.msra.mxu0 0.0
      %440 = vmatprep.subr.mxu0 0.0
      %441 = vmatpush1.msra.mxu0 0.0
      %442 = vmatprep.subr.mxu0 0.0
      %443 = vmatpush1.msra.mxu0 0.0
      %444 = vmatprep.subr.mxu0 0.0
      %445 = vmatpush1.msra.mxu0 0.0
      %446 = vmatprep.subr.mxu0 0.0
      %447 = vmatpush1.msra.mxu0 0.0
      %448 = vmatprep.subr.mxu0 0.0
      %449 = vmatpush1.msra.mxu0 0.0
      %450 = vmatprep.subr.mxu0 0.0
      %451 = vmatpush1.msra.mxu0 0.0
      %452 = vmatprep.mubr.f32.mxu0 0.0
      %453 = vmatmul.mubr.f32.gmra.mrb[0].mxu0 %v380
      %v454 = vpop.f32.mrb[0].mxu0
      %v455 = vadd.f32 %v357, %v454
      %v456 = vpop.f32.mrb[0].mxu0
      %457 = vmatprep.mubr.f32.mxu0 0.0
      %458 = vmatmul.mubr.f32.gmra.mrb[0].mxu0 %v382
      %v459 = vpop.f32.mrb[0].mxu0
      %v460 = vadd.f32 %v361, %v459
      %v461 = vpop.f32.mrb[0].mxu0
      %462 = vmatprep.mubr.f32.mxu0 0.0
      %463 = vmatmul.mubr.f32.gmra.mrb[0].mxu0 %v384
      %v464 = vpop.f32.mrb[0].mxu0
      %v465 = vadd.f32 %v365, %v464
      %v466 = vpop.f32.mrb[0].mxu0
      %467 = vmatprep.mubr.f32.mxu0 0.0
      %468 = vmatmul.mubr.f32.gmra.mrb[0].mxu0 %v386
      %v469 = vpop.f32.mrb[0].mxu0
      %v470 = vadd.f32 %v369, %v469
      %v471 = vpop.f32.mrb[0].mxu0
      %472 = vdwg.mxu0
      %v473 = vmul.f32 %v455, 0.01
      %v474 = vmul.f32 %v460, 0.01
      %v475 = vmul.f32 %v465, 0.01
      %v476 = vmul.f32 %v470, 0.01
      %v477 = vmax.f32 %v455, %v473
      %v478 = vmax.f32 %v460, %v474
      %v479 = vmax.f32 %v465, %v475
      %v480 = vmax.f32 %v470, %v476
      %v481 = vmul.f32 %v477, %v351
      %v482 = vmul.f32 %v478, %v352
      %v483 = vmul.f32 %v479, %v353
      %v484 = vmul.f32 %v480, %v354
      %v485 = vadd.f32 %v351, %v481
      %v486 = vadd.f32 %v352, %v482
      %v487 = vadd.f32 %v353, %v483
      %v488 = vadd.f32 %v354, %v484
      %489 = vset.pattern.permute.xlu0 2
      %490 = vperm.xlu0 %489, %v225
      %v491 = vpop.permute.xlu0 %490
      %493 = vset.pattern.permute.xlu0 2
      %494 = vperm.xlu0 %493, %v226
      %v495 = vpop.permute.xlu0 %494
      %497 = vset.pattern.permute.xlu0 2
      %498 = vperm.xlu0 %497, %v227
      %v499 = vpop.permute.xlu0 %498
      %501 = vset.pattern.permute.xlu0 2
      %502 = vperm.xlu0 %501, %v228
      %v503 = vpop.permute.xlu0 %502
      %505 = vrot.lane.b32.xlu0 %v221, 88
      %v506 = vpop.permute.xlu0 %505
      %507 = vrot.lane.b32.xlu0 %v222, 88
      %v508 = vpop.permute.xlu0 %507
      %509 = vrot.lane.b32.xlu0 %v223, 88
      %v510 = vpop.permute.xlu0 %509
      %511 = vrot.lane.b32.xlu0 %v224, 88
      %v512 = vpop.permute.xlu0 %511
      %v513 = vsel %vm379, %v506, 0
      %v515 = vsel %vm379, %v508, 0
      %v517 = vsel %vm379, %v510, 0
      %v519 = vsel %vm379, %v512, 0
      %521 = vmatprep.subr.mxu0 0.0
      %522 = vmatpush1.msra.mxu0 %v485
      %523 = vmatprep.subr.mxu0 0.0
      %524 = vmatpush1.msra.mxu0 %v486
      %525 = vmatprep.subr.mxu0 0.0
      %526 = vmatpush1.msra.mxu0 %v487
      %527 = vmatprep.subr.mxu0 0.0
      %528 = vmatpush1.msra.mxu0 %v488
      %529 = vmatprep.subr.mxu0 0.0
      %530 = vmatpush1.msra.mxu0 0.0
      %531 = vmatprep.subr.mxu0 0.0
      %532 = vmatpush1.msra.mxu0 0.0
      %533 = vmatprep.subr.mxu0 0.0
      %534 = vmatpush1.msra.mxu0 0.0
      %535 = vmatprep.subr.mxu0 0.0
      %536 = vmatpush1.msra.mxu0 0.0
      %537 = vmatprep.subr.mxu0 0.0
      %538 = vmatpush1.msra.mxu0 0.0
      %539 = vmatprep.subr.mxu0 0.0
      %540 = vmatpush1.msra.mxu0 0.0
      %541 = vmatprep.subr.mxu0 0.0
      %542 = vmatpush1.msra.mxu0 0.0
      %543 = vmatprep.subr.mxu0 0.0
      %544 = vmatpush1.msra.mxu0 0.0
      %545 = vmatprep.subr.mxu0 0.0
      %546 = vmatpush1.msra.mxu0 0.0
      %547 = vmatprep.subr.mxu0 0.0
      %548 = vmatpush1.msra.mxu0 0.0
      %549 = vmatprep.subr.mxu0 0.0
      %550 = vmatpush1.msra.mxu0 0.0
      %551 = vmatprep.subr.mxu0 0.0
      %552 = vmatpush1.msra.mxu0 0.0
      %553 = vmatprep.subr.mxu0 0.0
      %554 = vmatpush1.msra.mxu0 0.0
      %555 = vmatprep.subr.mxu0 0.0
      %556 = vmatpush1.msra.mxu0 0.0
      %557 = vmatprep.subr.mxu0 0.0
      %558 = vmatpush1.msra.mxu0 0.0
      %559 = vmatprep.subr.mxu0 0.0
      %560 = vmatpush1.msra.mxu0 0.0
      %561 = vmatprep.subr.mxu0 0.0
      %562 = vmatpush1.msra.mxu0 0.0
      %563 = vmatprep.subr.mxu0 0.0
      %564 = vmatpush1.msra.mxu0 0.0
      %565 = vmatprep.subr.mxu0 0.0
      %566 = vmatpush1.msra.mxu0 0.0
      %567 = vmatprep.subr.mxu0 0.0
      %568 = vmatpush1.msra.mxu0 0.0
      %569 = vmatprep.subr.mxu0 0.0
      %570 = vmatpush1.msra.mxu0 0.0
      %571 = vmatprep.subr.mxu0 0.0
      %572 = vmatpush1.msra.mxu0 0.0
      %573 = vmatprep.subr.mxu0 0.0
      %574 = vmatpush1.msra.mxu0 0.0
      %575 = vmatprep.subr.mxu0 0.0
      %576 = vmatpush1.msra.mxu0 0.0
      %577 = vmatprep.subr.mxu0 0.0
      %578 = vmatpush1.msra.mxu0 0.0
      %579 = vmatprep.subr.mxu0 0.0
      %580 = vmatpush1.msra.mxu0 0.0
      %581 = vmatprep.subr.mxu0 0.0
      %582 = vmatpush1.msra.mxu0 0.0
      %583 = vmatprep.subr.mxu0 0.0
      %584 = vmatpush1.msra.mxu0 0.0
      %585 = vmatprep.mubr.f32.mxu0 0.0
      %586 = vmatmul.mubr.f32.gmra.mrb[0].mxu0 %v513
      %v587 = vpop.f32.mrb[0].mxu0
      %v588 = vadd.f32 %v491, %v587
      %v589 = vpop.f32.mrb[0].mxu0
      %590 = vmatprep.mubr.f32.mxu0 0.0
      %591 = vmatmul.mubr.f32.gmra.mrb[0].mxu0 %v515
      %v592 = vpop.f32.mrb[0].mxu0
      %v593 = vadd.f32 %v495, %v592
      %v594 = vpop.f32.mrb[0].mxu0
      %595 = vmatprep.mubr.f32.mxu0 0.0
      %596 = vmatmul.mubr.f32.gmra.mrb[0].mxu0 %v517
      %v597 = vpop.f32.mrb[0].mxu0
      %v598 = vadd.f32 %v499, %v597
      %v599 = vpop.f32.mrb[0].mxu0
      %600 = vmatprep.mubr.f32.mxu0 0.0
      %601 = vmatmul.mubr.f32.gmra.mrb[0].mxu0 %v519
      %v602 = vpop.f32.mrb[0].mxu0
      %v603 = vadd.f32 %v503, %v602
      %v604 = vpop.f32.mrb[0].mxu0
      %605 = vdwg.mxu0
      %v606 = vmul.f32 %v588, 0.01
      %v607 = vmul.f32 %v593, 0.01
      %v608 = vmul.f32 %v598, 0.01
      %v609 = vmul.f32 %v603, 0.01
      %v610 = vmax.f32 %v588, %v606
      %v611 = vmax.f32 %v593, %v607
      %v612 = vmax.f32 %v598, %v608
      %v613 = vmax.f32 %v603, %v609
      %v614 = vld [vmem:[%s2] sm:$0xff]
      %v615 = vld [vmem:[%s4] sm:$0xff]
      %617 = vset.pattern.permute.xlu0 0
      %618 = vperm.xlu0 %617, %v615
      %v619 = vpop.permute.xlu0 %618
      %v622 = vsel %vm379, %v614, 0
      %624 = vmatprep.subr.mxu0 0.0
      %625 = vmatpush1.msra.mxu0 %v610
      %626 = vmatprep.subr.mxu0 0.0
      %627 = vmatpush1.msra.mxu0 %v611
      %628 = vmatprep.subr.mxu0 0.0
      %629 = vmatpush1.msra.mxu0 %v612
      %630 = vmatprep.subr.mxu0 0.0
      %631 = vmatpush1.msra.mxu0 %v613
      %632 = vmatprep.subr.mxu0 0.0
      %633 = vmatpush1.msra.mxu0 0.0
      %634 = vmatprep.subr.mxu0 0.0
      %635 = vmatpush1.msra.mxu0 0.0
      %636 = vmatprep.subr.mxu0 0.0
      %637 = vmatpush1.msra.mxu0 0.0
      %638 = vmatprep.subr.mxu0 0.0
      %639 = vmatpush1.msra.mxu0 0.0
      %640 = vmatprep.subr.mxu0 0.0
      %641 = vmatpush1.msra.mxu0 0.0
      %642 = vmatprep.subr.mxu0 0.0
      %643 = vmatpush1.msra.mxu0 0.0
      %644 = vmatprep.subr.mxu0 0.0
      %645 = vmatpush1.msra.mxu0 0.0
      %646 = vmatprep.subr.mxu0 0.0
      %647 = vmatpush1.msra.mxu0 0.0
      %648 = vmatprep.subr.mxu0 0.0
      %649 = vmatpush1.msra.mxu0 0.0
      %650 = vmatprep.subr.mxu0 0.0
      %651 = vmatpush1.msra.mxu0 0.0
      %652 = vmatprep.subr.mxu0 0.0
      %653 = vmatpush1.msra.mxu0 0.0
      %654 = vmatprep.subr.mxu0 0.0
      %655 = vmatpush1.msra.mxu0 0.0
      %656 = vmatprep.subr.mxu0 0.0
      %657 = vmatpush1.msra.mxu0 0.0
      %658 = vmatprep.subr.mxu0 0.0
      %659 = vmatpush1.msra.mxu0 0.0
      %660 = vmatprep.subr.mxu0 0.0
      %661 = vmatpush1.msra.mxu0 0.0
      %662 = vmatprep.subr.mxu0 0.0
      %663 = vmatpush1.msra.mxu0 0.0
      %664 = vmatprep.subr.mxu0 0.0
      %665 = vmatpush1.msra.mxu0 0.0
      %666 = vmatprep.subr.mxu0 0.0
      %667 = vmatpush1.msra.mxu0 0.0
      %668 = vmatprep.subr.mxu0 0.0
      %669 = vmatpush1.msra.mxu0 0.0
      %670 = vmatprep.subr.mxu0 0.0
      %671 = vmatpush1.msra.mxu0 0.0
      %672 = vmatprep.subr.mxu0 0.0
      %673 = vmatpush1.msra.mxu0 0.0
      %674 = vmatprep.subr.mxu0 0.0
      %675 = vmatpush1.msra.mxu0 0.0
      %676 = vmatprep.subr.mxu0 0.0
      %677 = vmatpush1.msra.mxu0 0.0
      %678 = vmatprep.subr.mxu0 0.0
      %679 = vmatpush1.msra.mxu0 0.0
      %680 = vmatprep.subr.mxu0 0.0
      %681 = vmatpush1.msra.mxu0 0.0
      %682 = vmatprep.subr.mxu0 0.0
      %683 = vmatpush1.msra.mxu0 0.0
      %684 = vmatprep.subr.mxu0 0.0
      %685 = vmatpush1.msra.mxu0 0.0
      %686 = vmatprep.subr.mxu0 0.0
      %687 = vmatpush1.msra.mxu0 0.0
      %688 = vmatprep.mubr.f32.mxu0 0.0
      %689 = vmatmul.mubr.f32.gmra.mrb[0].mxu0 %v622
      %v690 = vpop.f32.mrb[0].mxu0
      %v691 = vadd.f32 %v619, %v690
      %v692 = vpop.f32.mrb[0].mxu0
      %693 = vdwg.mxu0
      %694 = vst [vmem:[%s219] sm:$0xff] %v691
      %p695 = scmp.lt.s32.totalorder %s16, 2
      %s696 = scalar_select %p695, %s16, 2
      %s697 = smul.addr %s696, 8
      %s698 = scalar_lea.vmem %s5, %s697
      // Predicated region
      $region41: #{test_model2_forward.1} parent=39 // pred_check
        %p699 = pneg %p144
      $region42: #{test_model2_forward.1} parent=39 // pred_check_branch
        %701 = sbr.rel (%p699) target = $region44
      $region43: #{test_model2_forward.1} parent=39 // pred_region
        _
      $region44: #{test_model2_forward.1} parent=39 // pred_fallthru
        _
    $region40: #{test_model2_forward.1} parent=5 // pred_fallthru
      _
    %p702 = scmp.le.s32.totalorder 2, %s11
    // Predicated region
    $region45: #{test_model2_forward.1} parent=5 // pred_check
      %p703 = pneg %p702
    $region46: #{test_model2_forward.1} parent=5 // pred_check_branch
      %705 = sbr.rel (%p703) target = $region48
    $region47: #{test_model2_forward.1} parent=5 // pred_region
      %s706 = ssub.s32 %s11, 2
      // Predicated region
      $region49: #{test_model2_forward.1} parent=47 // pred_check
        %p707 = pneg %p150
      $region50: #{test_model2_forward.1} parent=47 // pred_check_branch
        %709 = sbr.rel (%p707) target = $region52
      $region51: #{test_model2_forward.1} parent=47 // pred_region
        %p710 = scmp.lt.s32.totalorder %s17, 2
        %s711 = scalar_select %p710, %s17, 2
        %s712 = smul.addr %s711, 8
        %s713 = scalar_lea.vmem %s5, %s712
      $region52: #{test_model2_forward.1} parent=47 // pred_fallthru
        _
    $region48: #{test_model2_forward.1} parent=5 // pred_fallthru
      _
  $region6: #{test_model2_forward.1} parent=0 // loop_footer
    %s15 = sadd.s32 1, %s11
  $region7: #{test_model2_forward.1} parent=0 // loop_footer_branch
    %10 = sbr.rel target = $region3
  $region8: #{test_model2_forward.1} parent=0 // loop_exit
    _

</llo_original>
